<compile_context>
chip_gen: v7x
topology: tpu7x:2x2x1
jax: 0.10.0
libtpu: 0.0.40
codegen_flags: <defaults>
</compile_context>

<pallas_src>
import functools

import jax
import jax.numpy as jnp
from jax import lax
from jax.experimental import pallas as pl
from jax.experimental.pallas import tpu as pltpu


MXU_DTYPE = jnp.bfloat16            # MXU operand dtype (accumulation stays f32)


def _default_vmem_limit():
    # Generation-aware VMEM budget: ~3/4 of physical (96 MiB on v5e/v6e 128 MiB
    # parts, 48 MiB on v7x 64 MiB parts); conservative fallback if query fails.
    try:
        cap = pltpu.get_tpu_info().vmem_capacity_bytes
        return int(min(cap * 3 // 4, 96 * 1024 * 1024))
    except Exception:
        return 48 * 1024 * 1024


_VMEM_LIMIT = _default_vmem_limit()


def _round_up(x, m):
    return ((x + m - 1) // m) * m


def _pick_tile(n, cands=(256, 128, 64, 32, 16, 8)):
    """Largest row tile dividing n that still yields >=2 grid points (keeps
    both v7x TensorCores busy); falls back to the full extent."""
    for t in cands:
        if n % t == 0 and n // t >= 2:
            return t
    return n


def _elu(r):
    # clamp the exp argument so the discarded branch never produces inf
    return jnp.where(r > 0.0, r, jnp.exp(jnp.minimum(r, 0.0)) - 1.0)


# ----------------------------- generic matmul ------------------------------ #

def _matmul_kernel(*refs, act, has_bias):
    if has_bias:
        a_ref, b_ref, bias_ref, o_ref, acc_ref = refs
    else:
        a_ref, b_ref, o_ref, acc_ref = refs
        bias_ref = None

    @pl.when(pl.program_id(2) == 0)
    def _():
        acc_ref[...] = jnp.zeros_like(acc_ref)

    acc_ref[...] += jnp.dot(a_ref[...], b_ref[...],
                            preferred_element_type=jnp.float32)

    @pl.when(pl.program_id(2) == pl.num_programs(2) - 1)
    def _():
        r = acc_ref[...]
        if has_bias:
            r = r + bias_ref[...].astype(jnp.float32)    # epilogue in f32
        if act == "relu":
            r = jnp.maximum(r, 0.0)
        elif act == "elu":
            r = _elu(r)
        o_ref[...] = r.astype(o_ref.dtype)


def pallas_matmul(a, b, bias=None, act=None, out_dtype=jnp.float32):
    """act(a @ b + bias). bf16 MXU operands, f32 accumulation, row/K-tiled so
    big shapes stream through VMEM with double-buffering; padded to
    (8,128)-aligned tiles so in-kernel stores are lane-dense."""
    M, K = a.shape
    K2, N = b.shape
    assert K == K2
    a = a.astype(MXU_DTYPE)
    b = b.astype(MXU_DTYPE)

    tm = 512 if M >= 512 else _round_up(M, 8)
    tn = 512 if N >= 512 else _round_up(N, 128)
    tk = 1024 if K >= 1024 else _round_up(K, 128)
    Mp, Np, Kp = _round_up(M, tm), _round_up(N, tn), _round_up(K, tk)
    if (Mp, Kp) != (M, K):
        a = jnp.pad(a, ((0, Mp - M), (0, Kp - K)))
    if (Kp, Np) != (K, N):
        b = jnp.pad(b, ((0, Kp - K), (0, Np - N)))

    args = [a, b]
    in_specs = [pl.BlockSpec((tm, tk), lambda i, j, k: (i, k)),
                pl.BlockSpec((tk, tn), lambda i, j, k: (k, j))]
    has_bias = bias is not None
    if has_bias:
        bias2 = jnp.pad(bias.astype(jnp.float32).reshape(1, N),
                        ((0, 0), (0, Np - N)))
        args.append(bias2)
        in_specs.append(pl.BlockSpec((1, tn), lambda i, j, k: (0, j)))

    out = pl.pallas_call(
        functools.partial(_matmul_kernel, act=act, has_bias=has_bias),
        out_shape=jax.ShapeDtypeStruct((Mp, Np), out_dtype),
        grid=(Mp // tm, Np // tn, Kp // tk),
        in_specs=in_specs,
        out_specs=pl.BlockSpec((tm, tn), lambda i, j, k: (i, j)),
        scratch_shapes=[pltpu.VMEM((tm, tn), jnp.float32)],
        compiler_params=pltpu.CompilerParams(
            dimension_semantics=("parallel", "parallel", "arbitrary"),
            vmem_limit_bytes=_VMEM_LIMIT),
    )(*args)
    if (Mp, Np) != (M, N):
        out = out[:M, :N]
    return out


# ------------------------ NGCN block (MixHop upper/bottom) ------------------ #

def ngcn_block(x, w_cat, b_cat, adj_bf, chunks, dense_mode):
    """One MixHop block built from row/K-tiled matmuls.

    Sparse mode: h = relu(X @ W_cat + b_cat), then chunk i receives i extra
    adjacency hops.  Dense mode: h = X @ W_cat, hops, then + b_cat.  The
    adjacency hop is only applied to the trailing (not yet emitted) chunk
    columns, which removes the ~2x redundant MXU work of hopping the full
    concatenated width."""
    if dense_mode:
        h = pallas_matmul(x, w_cat)
    else:
        h = pallas_matmul(x, w_cat, b_cat, act="relu")

    pieces = [h[:, :chunks[0]]]
    cur = h[:, chunks[0]:]
    for i in range(1, len(chunks)):
        cur = pallas_matmul(adj_bf, cur)                   # one more hop (trailing cols)
        pieces.append(cur[:, :chunks[i]])
        if i + 1 < len(chunks):
            cur = cur[:, chunks[i]:]
    out = pieces[0] if len(pieces) == 1 else jnp.concatenate(pieces, axis=1)
    if dense_mode:
        out = out + b_cat[None, :]
    return out


# -------------- fused attention + output proj + residual + LN1 -------------- #

def _attn_ln_kernel(x_ref, q_ref, k_ref, v_ref, pw_ref, pb_ref, g_ref, bt_ref,
                    o_ref, *, num_heads, scale, eps, d_model):
    D = d_model
    hd = D // num_heads
    xres = x_ref[0].astype(jnp.float32)                    # (tq, D) residual
    q_all = q_ref[0]                                       # (tq, D) bf16
    k_all = k_ref[0]                                       # (N, D)  bf16
    v_all = v_ref[0]                                       # (N, D)  bf16
    dims = (((1,), (1,)), ((), ()))                        # q @ k^T without .T

    acc = None
    for h in range(num_heads):                             # per-head views only here
        qh = q_all[:, h * hd:(h + 1) * hd]
        kh = k_all[:, h * hd:(h + 1) * hd]
        vh = v_all[:, h * hd:(h + 1) * hd]
        s = lax.dot_general(qh, kh, dims,
                            preferred_element_type=jnp.float32) * scale
        m = jnp.max(s, axis=-1, keepdims=True)
        p = jnp.exp(s - m)
        p = p * pl.reciprocal(jnp.sum(p, axis=-1, keepdims=True), approx=True)
        oh = jnp.dot(p.astype(MXU_DTYPE), vh,
                     preferred_element_type=jnp.float32)   # (tq, hd)
        contrib = jnp.dot(oh.astype(MXU_DTYPE), pw_ref[h * hd:(h + 1) * hd, :],
                          preferred_element_type=jnp.float32)  # (tq, D)
        acc = contrib if acc is None else acc + contrib

    z = xres + acc + pb_ref[...]                           # residual + proj bias
    mean = jnp.mean(z, axis=-1, keepdims=True)
    zc = z - mean
    var = jnp.mean(zc * zc, axis=-1, keepdims=True)
    o_ref[0] = (zc * lax.rsqrt(var + eps) * g_ref[...] + bt_ref[...]
                ).astype(o_ref.dtype)


def pallas_attention_ln(x, qkv, p, num_heads, eps=1e-5):
    """Fused self-attention (softmax + PV + out projection) + residual + LN1.
    Row-tiled over query tiles with grid=(B, N//tq); K/V are full per block."""
    B, N, D = x.shape
    hd = D // num_heads
    scale = float(hd) ** -0.5
    tq = _pick_tile(N)
    q = qkv[:, :, :D]
    k = qkv[:, :, D:2 * D]
    v = qkv[:, :, 2 * D:]

    return pl.pallas_call(
        functools.partial(_attn_ln_kernel, num_heads=num_heads, scale=scale,
                          eps=eps, d_model=D),
        out_shape=jax.ShapeDtypeStruct((B, N, D), jnp.float32),
        grid=(B, N // tq),
        in_specs=[pl.BlockSpec((1, tq, D), lambda b, qi: (b, qi, 0)),   # residual
                  pl.BlockSpec((1, tq, D), lambda b, qi: (b, qi, 0)),   # q tile
                  pl.BlockSpec((1, N, D), lambda b, qi: (b, 0, 0)),     # full K
                  pl.BlockSpec((1, N, D), lambda b, qi: (b, 0, 0)),     # full V
                  pl.BlockSpec((D, D), lambda b, qi: (0, 0)),           # proj_w
                  pl.BlockSpec((1, D), lambda b, qi: (0, 0)),           # proj_b
                  pl.BlockSpec((1, D), lambda b, qi: (0, 0)),           # norm1_g
                  pl.BlockSpec((1, D), lambda b, qi: (0, 0))],          # norm1_b
        out_specs=pl.BlockSpec((1, tq, D), lambda b, qi: (b, qi, 0)),
        compiler_params=pltpu.CompilerParams(
            dimension_semantics=("parallel", "parallel"),
            vmem_limit_bytes=_VMEM_LIMIT),
    )(x.astype(MXU_DTYPE), q, k, v, p["proj_w"], p["proj_b"],
      p["norm1_g"], p["norm1_b"])


# ----------------- fused FFN (ff1+ReLU+ff2) + residual + LN2 ---------------- #

def _ffn_ln_kernel(x_ref, w1_ref, b1_ref, w2_ref, b2_ref, g_ref, bt_ref, o_ref,
                   *, eps):
    x = x_ref[...].astype(jnp.float32)                      # (tm, D)
    h = jnp.dot(x.astype(MXU_DTYPE), w1_ref[...],
                preferred_element_type=jnp.float32) + b1_ref[...]
    h = jnp.maximum(h, 0.0)                                 # dff-wide hidden stays in VMEM
    y = jnp.dot(h.astype(MXU_DTYPE), w2_ref[...],
                preferred_element_type=jnp.float32) + b2_ref[...]
    z = x + y                                               # residual in f32
    mean = jnp.mean(z, axis=-1, keepdims=True)
    zc = z - mean
    var = jnp.mean(zc * zc, axis=-1, keepdims=True)
    o_ref[...] = (zc * lax.rsqrt(var + eps) * g_ref[...] + bt_ref[...]
                  ).astype(o_ref.dtype)


def pallas_ffn_ln(x2d, p, eps=1e-5):
    M, D = x2d.shape
    dff = p["ff1_w"].shape[1]
    tm = _pick_tile(M)
    return pl.pallas_call(
        functools.partial(_ffn_ln_kernel, eps=eps),
        out_shape=jax.ShapeDtypeStruct((M, D), jnp.float32),
        grid=(M // tm,),
        in_specs=[pl.BlockSpec((tm, D), lambda i: (i, 0)),
                  pl.BlockSpec((D, dff), lambda i: (0, 0)),
                  pl.BlockSpec((1, dff), lambda i: (0, 0)),
                  pl.BlockSpec((dff, D), lambda i: (0, 0)),
                  pl.BlockSpec((1, D), lambda i: (0, 0)),
                  pl.BlockSpec((1, D), lambda i: (0, 0)),
                  pl.BlockSpec((1, D), lambda i: (0, 0))],
        out_specs=pl.BlockSpec((tm, D), lambda i: (i, 0)),
        compiler_params=pltpu.CompilerParams(
            dimension_semantics=("parallel",),
            vmem_limit_bytes=_VMEM_LIMIT),
    )(x2d, p["ff1_w"], p["ff1_b"], p["ff2_w"], p["ff2_b"],
      p["norm2_g"], p["norm2_b"])


# -------------------- fused bilinear + ELU + three decoders ----------------- #

def _bilinear_decoder_kernel(x1_ref, x2_ref, wt_ref, bb_ref, w1_ref, b1_ref,
                             w2_ref, b2_ref, o_ref, *, hidden1):
    # Bilinear form computed in vregs from (P, J) operands: no (P, J*J) HBM blowup.
    x1 = x1_ref[...].astype(jnp.float32)                    # (P, J)
    x2b = x2_ref[...].astype(MXU_DTYPE)                     # (P, J)
    P = x1.shape[0]
    col = lax.broadcasted_iota(jnp.int32, (1, hidden1), 1)
    feat = jnp.zeros((P, hidden1), jnp.float32)
    for h in range(hidden1):
        # t_h[p, i] = sum_j x2[p, j] * W[h, i, j]   (wt_ref[h] = W[h].T)
        t_h = jnp.dot(x2b, wt_ref[h], preferred_element_type=jnp.float32)
        contrib = jnp.sum(x1 * t_h, axis=-1, keepdims=True)      # (P, 1)
        feat = feat + contrib * (col == h).astype(jnp.float32)
    feat = _elu(feat + bb_ref[...])                              # (P, H1)
    hid = _elu(jnp.dot(feat.astype(MXU_DTYPE), w1_ref[...],
                       preferred_element_type=jnp.float32) + b1_ref[...])
    out = jnp.dot(hid.astype(MXU_DTYPE), w2_ref[...],
                  preferred_element_type=jnp.float32) + b2_ref[...]
    o_ref[...] = out.astype(o_ref.dtype)                         # (P, 3)


def pallas_bilinear_decoders(x1, x2, prep):
    # TODO(synk): grid=(1,) here keeps the default double-buffering; for real
    # pair counts row-tile P and unroll the hidden1 loop in blocks.
    P, J = x1.shape
    H1 = prep["bil_wt"].shape[0]
    H23 = prep["dec_w1"].shape[1]

    def full(shp):
        return pl.BlockSpec(shp, lambda i: (0,) * len(shp))

    return pl.pallas_call(
        functools.partial(_bilinear_decoder_kernel, hidden1=H1),
        out_shape=jax.ShapeDtypeStruct((P, 3), jnp.float32),
        grid=(1,),
        in_specs=[full((P, J)), full((P, J)), full((H1, J, J)), full((1, H1)),
                  full((H1, H23)), full((1, H23)), full((H23, 3)), full((1, 3))],
        out_specs=full((P, 3)),
        compiler_params=pltpu.CompilerParams(
            dimension_semantics=("arbitrary",),
            vmem_limit_bytes=_VMEM_LIMIT),
    )(x1, x2, prep["bil_wt"], prep["bil_b"],
      prep["dec_w1"], prep["dec_b1"], prep["dec_w2"], prep["dec_b2"])


# ----------------------------- model (JAX glue) ----------------------------- #

def init_params(key, cfg, feature_number):
    keys = iter(jax.random.split(key, 64))

    def w(shape, scale=0.1):
        return scale * jax.random.normal(next(keys), shape, jnp.float32)

    af1 = sum(cfg["layers_1"])
    D = cfg["d_model"]
    dff = int(cfg["d_ff"] * D)
    H1, H2 = cfg["hidden1"], cfg["hidden2"]
    af2 = sum(cfg["layers_2"])

    params = {
        "upper": [dict(w=w((feature_number, o)), b=w((o,), 0.05)) for o in cfg["layers_1"]],
        "bottom": [dict(w=w((af1, o)), b=w((o,), 0.05)) for o in cfg["layers_2"]],
        "encoder": [],
        "bilinear_w": w((H1, af2, af2)),
        "bilinear_b": w((H1,), 0.05),
    }
    for _ in range(cfg["encoder_layers"]):
        params["encoder"].append(dict(
            qkv_w=w((D, 3 * D)), qkv_b=w((3 * D,), 0.05),
            proj_w=w((D, D)), proj_b=w((D,), 0.05),
            ff1_w=w((D, dff)), ff1_b=w((dff,), 0.05),
            ff2_w=w((dff, D)), ff2_b=w((D,), 0.05),
            norm1_g=jnp.ones((D,), jnp.float32), norm1_b=jnp.zeros((D,), jnp.float32),
            norm2_g=jnp.ones((D,), jnp.float32), norm2_b=jnp.zeros((D,), jnp.float32),
        ))
    for name in ("dec_dl", "dec_lm", "dec_md"):
        params[name] = dict(w1=w((H1, H2)), b1=w((H2,), 0.05),
                            w2=w((H2, 1)), b2=w((1,), 0.05))
    return params


def prepare_params(params, cfg):
    """Pre-cast / pre-arrange static weights once (bf16 MXU operands, f32
    biases, concatenated MixHop weights, block-diagonal decoder weights) so no
    per-call astype/copy work sits on the critical path."""
    D = cfg["d_model"]
    prep = {
        "up_w": jnp.concatenate([p["w"] for p in params["upper"]], axis=1).astype(MXU_DTYPE),
        "up_b": jnp.concatenate([p["b"] for p in params["upper"]]).astype(jnp.float32),
        "bot_w": jnp.concatenate([p["w"] for p in params["bottom"]], axis=1).astype(MXU_DTYPE),
        "bot_b": jnp.concatenate([p["b"] for p in params["bottom"]]).astype(jnp.float32),
        "encoder": [],
    }
    for p in params["encoder"]:
        prep["encoder"].append(dict(
            qkv_w=p["qkv_w"].astype(MXU_DTYPE), qkv_b=p["qkv_b"].astype(jnp.float32),
            proj_w=p["proj_w"].astype(MXU_DTYPE),
            proj_b=p["proj_b"].reshape(1, D).astype(jnp.float32),
            ff1_w=p["ff1_w"].astype(MXU_DTYPE),
            ff1_b=p["ff1_b"].reshape(1, -1).astype(jnp.float32),
            ff2_w=p["ff2_w"].astype(MXU_DTYPE),
            ff2_b=p["ff2_b"].reshape(1, D).astype(jnp.float32),
            norm1_g=p["norm1_g"].reshape(1, D).astype(jnp.float32),
            norm1_b=p["norm1_b"].reshape(1, D).astype(jnp.float32),
            norm2_g=p["norm2_g"].reshape(1, D).astype(jnp.float32),
            norm2_b=p["norm2_b"].reshape(1, D).astype(jnp.float32)))

    H1 = params["bilinear_w"].shape[0]
    H2 = params["dec_dl"]["w1"].shape[1]
    prep["bil_wt"] = params["bilinear_w"].transpose(0, 2, 1).astype(MXU_DTYPE)  # (H1, J, J) = W[h].T
    prep["bil_b"] = params["bilinear_b"].reshape(1, H1).astype(jnp.float32)
    prep["dec_w1"] = jnp.concatenate([params["dec_dl"]["w1"], params["dec_md"]["w1"],
                                      params["dec_lm"]["w1"]], axis=1).astype(MXU_DTYPE)
    prep["dec_b1"] = jnp.concatenate([params["dec_dl"]["b1"], params["dec_md"]["b1"],
                                      params["dec_lm"]["b1"]]).reshape(1, 3 * H2).astype(jnp.float32)
    z = jnp.zeros((H2, 1), jnp.float32)
    prep["dec_w2"] = jnp.concatenate([
        jnp.concatenate([params["dec_dl"]["w2"], z, z], axis=1),
        jnp.concatenate([z, params["dec_md"]["w2"], z], axis=1),
        jnp.concatenate([z, z, params["dec_lm"]["w2"]], axis=1)], axis=0).astype(MXU_DTYPE)
    prep["dec_b2"] = jnp.stack([params["dec_dl"]["b2"][0], params["dec_md"]["b2"][0],
                                params["dec_lm"]["b2"][0]]).reshape(1, 3).astype(jnp.float32)
    return prep


def densify(features):
    rc = features["indices"]
    dense = jnp.zeros(features["dimensions"], jnp.float32)
    return dense.at[rc[0], rc[1]].add(features["values"])


def encoder_layer_forward(x, p, num_heads):
    B, N, D = x.shape
    x2d = x.reshape(B * N, D)
    # (1) lane-dense QKV projection (bf16 out halves the intermediate DMA)
    qkv = pallas_matmul(x2d, p["qkv_w"], p["qkv_b"], out_dtype=MXU_DTYPE)
    # (2) fused attention + output proj + residual + LN1  (dropout eval -> identity)
    out1 = pallas_attention_ln(x, qkv.reshape(B, N, 3 * D), p, num_heads)
    # (3) fused ff1 + ReLU + ff2 + residual + LN2
    out2 = pallas_ffn_ln(out1.reshape(B * N, D), p)
    return out2.reshape(B, N, D)


def embed(adj, features, prep, cfg):
    x = densify(features)                                   # (N_nodes, feature_number)
    adj_bf = adj.astype(MXU_DTYPE)                          # cast adjacency once
    # upper (SparseNGCN-style) block  |  F.dropout (eval) -> identity
    af1 = ngcn_block(x, prep["up_w"], prep["up_b"], adj_bf, cfg["layers_1"],
                     dense_mode=False)
    # bottom (DenseNGCN-style) block
    feat = ngcn_block(af1, prep["bot_w"], prep["bot_b"], adj_bf, cfg["layers_2"],
                      dense_mode=True)[None]
    for lp in prep["encoder"]:
        feat = encoder_layer_forward(feat, lp, cfg["num_heads"])
    return feat


def mixhop_forward(adj, features, idx, prep, cfg):
    latent = embed(adj, features, prep, cfg)                # (1, N_nodes, af2)
    feat_p1 = latent[:, idx[0], :]
    feat_p2 = latent[:, idx[1], :]
    B, P, J = feat_p1.shape
    x1 = feat_p1.reshape(B * P, J)
    x2 = feat_p2.reshape(B * P, J)
    preds = pallas_bilinear_decoders(x1, x2, prep)
    predictions_DLI = preds[:, 0].reshape(B, P, 1)
    predictions_DMI = preds[:, 1].reshape(B, P, 1)
    predictions_MLI = preds[:, 2].reshape(B, P, 1)
    return predictions_DLI, predictions_DMI, predictions_MLI, latent


# -------------------------- pure-JAX f32 reference -------------------------- #

def _layernorm_ref(x, g, b, eps=1e-5):
    mu = jnp.mean(x, axis=-1, keepdims=True)
    xc = x - mu
    var = jnp.mean(xc * xc, axis=-1, keepdims=True)
    return xc / jnp.sqrt(var + eps) * g + b


def reference_forward(adj, features, idx, params, cfg):
    x = densify(features)
    outs = []
    for i, p in enumerate(params["upper"]):
        h = jax.nn.relu(x @ p["w"] + p["b"])
        for _ in range(i):
            h = adj @ h
        outs.append(h)
    af1 = jnp.concatenate(outs, axis=1)
    outs2 = []
    for i, p in enumerate(params["bottom"]):
        h = af1 @ p["w"]
        for _ in range(i):
            h = adj @ h
        outs2.append(h + p["b"][None, :])
    feat = jnp.concatenate(outs2, axis=1)[None]

    D = cfg["d_model"]
    H = cfg["num_heads"]
    hd = D // H
    for p in params["encoder"]:
        B, N, _ = feat.shape
        xx = feat.reshape(B * N, D)
        qkv = (xx @ p["qkv_w"] + p["qkv_b"]).reshape(B, N, 3, H, hd).transpose(2, 0, 3, 1, 4)
        q, k, v = qkv[0], qkv[1], qkv[2]
        s = jnp.einsum("bhqd,bhkd->bhqk", q, k) * (hd ** -0.5)
        a = jax.nn.softmax(s, axis=-1)
        o = jnp.einsum("bhqk,bhkd->bhqd", a, v).transpose(0, 2, 1, 3).reshape(B * N, D)
        o = o @ p["proj_w"] + p["proj_b"]
        out1 = _layernorm_ref(xx + o, p["norm1_g"], p["norm1_b"])
        ff = jax.nn.relu(out1 @ p["ff1_w"] + p["ff1_b"]) @ p["ff2_w"] + p["ff2_b"]
        out2 = _layernorm_ref(out1 + ff, p["norm2_g"], p["norm2_b"])
        feat = out2.reshape(B, N, D)
    latent = feat

    f1, f2 = latent[:, idx[0], :], latent[:, idx[1], :]
    B, P, J = f1.shape
    x1, x2 = f1.reshape(B * P, J), f2.reshape(B * P, J)
    fb = jnp.einsum("pi,hij,pj->ph", x1, params["bilinear_w"], x2) + params["bilinear_b"]
    fb = jax.nn.elu(fb)

    def dec(dp):
        h = jax.nn.elu(fb @ dp["w1"] + dp["b1"])
        return (h @ dp["w2"] + dp["b2"]).reshape(B, P, 1)

    return dec(params["dec_dl"]), dec(params["dec_md"]), dec(params["dec_lm"]), latent


# ----------------------------------- main ----------------------------------- #

if __name__ == "__main__":
    key = jax.random.PRNGKey(0)
    N_nodes, feature_number = 16, 32
    cfg = dict(layers_1=[8, 8], layers_2=[8, 8], hidden1=16, hidden2=8,
               encoder_layers=2, num_heads=2, d_model=16, d_ff=2, dropout=0.5)
    assert cfg["d_model"] == sum(cfg["layers_2"])

    k_adj, k_idx, k_val, k_param = jax.random.split(key, 4)

    # symmetric normalized adjacency D^-1/2 (A + I) D^-1/2
    a = (jax.random.uniform(k_adj, (N_nodes, N_nodes)) < 0.3).astype(jnp.float32)
    a = jnp.minimum(jnp.maximum(a, a.T) + jnp.eye(N_nodes, dtype=jnp.float32), 1.0)
    dinv = 1.0 / jnp.sqrt(jnp.sum(a, axis=1))
    adj = a * dinv[:, None] * dinv[None, :]

    # sparse COO features (equivalent of torch.sparse_coo_tensor(...).to_dense())
    nnz = 64
    rows = jax.random.randint(k_idx, (nnz,), 0, N_nodes)
    cols = jax.random.randint(jax.random.fold_in(k_idx, 1), (nnz,), 0, feature_number)
    vals = jax.random.normal(k_val, (nnz,), jnp.float32)
    features = {"indices": jnp.stack([rows, cols]),
                "values": vals,
                "dimensions": (N_nodes, feature_number)}

    idx = jnp.array([[0, 1, 2, 3], [4, 5, 6, 7]], dtype=jnp.int32)
    params = init_params(k_param, cfg, feature_number)
    prep = prepare_params(params, cfg)

    out = mixhop_forward(adj, features, idx, prep, cfg)
    jax.block_until_ready(out)
    p_dli, p_dmi, p_mli, latent = out
    assert p_dli.shape == (1, 4, 1) and p_dmi.shape == (1, 4, 1) and p_mli.shape == (1, 4, 1)
    assert latent.shape == (1, N_nodes, sum(cfg["layers_2"]))

    # correctness guard vs a pure-JAX f32 reference (loose tolerance: bf16 MXU
    # operands + approximate reciprocal in the softmax)
    ref = reference_forward(adj, features, idx, params, cfg)
    max_diff = max(float(jnp.max(jnp.abs(o - r))) for o, r in zip(out, ref))
    assert max_diff < 0.25, f"pallas/reference mismatch: {max_diff}"

    print("KERNEL_OK")
</pallas_src>

<mosaic_0001>
module attributes {stable_mosaic.version = 11 : i64} {
  func.func @_matmul_kernel(%arg0: i32, %arg1: i32, %arg2: i32, %arg3: memref<16x128xbf16, #tpu.memory_space<vmem>>, %arg4: memref<128x128xbf16, #tpu.memory_space<vmem>>, %arg5: memref<1x128xf32, #tpu.memory_space<vmem>>, %arg6: memref<16x128xf32, #tpu.memory_space<vmem>>, %arg7: memref<16x128xf32, #tpu.memory_space<vmem>>) attributes {dimension_semantics = [#tpu.dimension_semantics<parallel>, #tpu.dimension_semantics<parallel>, #tpu.dimension_semantics<arbitrary>], iteration_bounds = array<i64: 1, 1, 1>, scalar_prefetch = 0 : i64, scratch_operands = 1 : i64, tpu.core_type = #tpu.core_type<tc>, window_params = [{transform_indices = @transform_0, window_bounds = array<i64: 16, 128>}, {transform_indices = @transform_1, window_bounds = array<i64: 128, 128>}, {transform_indices = @transform_2, window_bounds = array<i64: 1, 128>}, {transform_indices = @transform_3, window_bounds = array<i64: 16, 128>}]} {
    %c0_i32 = arith.constant 0 : i32
    %0 = arith.cmpi eq, %arg2, %c0_i32 : i32
    %1 = arith.extui %0 : i1 to i32
    %c0_i32_0 = arith.constant 0 : i32
    %2 = arith.cmpi ne, %1, %c0_i32_0 : i32
    scf.if %2 {
      %cst_10 = arith.constant 0.000000e+00 : f32
      %12 = vector.broadcast %cst_10 : f32 to vector<16x128xf32>
      %c0_11 = arith.constant 0 : index
      %c0_12 = arith.constant 0 : index
      %13 = vector.load %arg7[%c0_11, %c0_12] : memref<16x128xf32, #tpu.memory_space<vmem>>, vector<16x128xf32>
      tpu.vector_store %arg7[%c0_11, %c0_12], %12 {strides = array<i32>} : memref<16x128xf32, #tpu.memory_space<vmem>>, vector<16x128xf32>,
    } else {
    }
    %c0 = arith.constant 0 : index
    %c0_1 = arith.constant 0 : index
    %3 = vector.load %arg7[%c0, %c0_1] : memref<16x128xf32, #tpu.memory_space<vmem>>, vector<16x128xf32>
    %c0_2 = arith.constant 0 : index
    %c0_3 = arith.constant 0 : index
    %4 = vector.load %arg3[%c0_2, %c0_3] : memref<16x128xbf16, #tpu.memory_space<vmem>>, vector<16x128xbf16>
    %c0_4 = arith.constant 0 : index
    %c0_5 = arith.constant 0 : index
    %5 = vector.load %arg4[%c0_4, %c0_5] : memref<128x128xbf16, #tpu.memory_space<vmem>>, vector<128x128xbf16>
    %cst = arith.constant dense<0.000000e+00> : vector<16x128xf32>
    %6 = tpu.matmul %4, %5, %cst {dimension_numbers = #tpu.dot_dimension_numbers<[1], [0], [0], [1], [0, 0, 1, 1], [], []>} : vector<16x128xbf16>, vector<128x128xbf16>, vector<16x128xf32> -> vector<16x128xf32>
    %7 = arith.addf %3, %6 : vector<16x128xf32>
    %c0_6 = arith.constant 0 : index
    %c0_7 = arith.constant 0 : index
    %8 = vector.load %arg7[%c0_6, %c0_7] : memref<16x128xf32, #tpu.memory_space<vmem>>, vector<16x128xf32>
    tpu.vector_store %arg7[%c0_6, %c0_7], %7 {strides = array<i32>} : memref<16x128xf32, #tpu.memory_space<vmem>>, vector<16x128xf32>,
    %c0_i32_8 = arith.constant 0 : i32
    %9 = arith.cmpi eq, %arg2, %c0_i32_8 : i32
    %10 = arith.extui %9 : i1 to i32
    %c0_i32_9 = arith.constant 0 : i32
    %11 = arith.cmpi ne, %10, %c0_i32_9 : i32
    scf.if %11 {
      %c0_10 = arith.constant 0 : index
      %c0_11 = arith.constant 0 : index
      %12 = vector.load %arg7[%c0_10, %c0_11] : memref<16x128xf32, #tpu.memory_space<vmem>>, vector<16x128xf32>
      %c0_12 = arith.constant 0 : index
      %c0_13 = arith.constant 0 : index
      %13 = vector.load %arg5[%c0_12, %c0_13] : memref<1x128xf32, #tpu.memory_space<vmem>>, vector<1x128xf32>
      %14 = vector.broadcast %13 : vector<1x128xf32> to vector<16x128xf32>
      %15 = arith.addf %12, %14 : vector<16x128xf32>
      %cst_14 = arith.constant 0.000000e+00 : f32
      %16 = vector.broadcast %cst_14 : f32 to vector<16x128xf32>
      %17 = arith.maximumf %15, %16 : vector<16x128xf32>
      %c0_15 = arith.constant 0 : index
      %c0_16 = arith.constant 0 : index
      %18 = vector.load %arg6[%c0_15, %c0_16] : memref<16x128xf32, #tpu.memory_space<vmem>>, vector<16x128xf32>
      tpu.vector_store %arg6[%c0_15, %c0_16], %17 {strides = array<i32>} : memref<16x128xf32, #tpu.memory_space<vmem>>, vector<16x128xf32>,
    } else {
    }
    return
  }
  func.func @transform_0(%arg0: i32, %arg1: i32, %arg2: i32) -> (i32, i32) {
    %c0_i32 = arith.constant 0 : i32
    return %arg0, %arg2 : i32, i32
  }
  func.func @transform_1(%arg0: i32, %arg1: i32, %arg2: i32) -> (i32, i32) {
    %c0_i32 = arith.constant 0 : i32
    return %arg2, %arg1 : i32, i32
  }
  func.func @transform_2(%arg0: i32, %arg1: i32, %arg2: i32) -> (i32, i32) {
    %c0_i32 = arith.constant 0 : i32
    %c0_i32_0 = arith.constant 0 : i32
    return %c0_i32, %arg1 : i32, i32
  }
  func.func @transform_3(%arg0: i32, %arg1: i32, %arg2: i32) -> (i32, i32) {
    %c0_i32 = arith.constant 0 : i32
    return %arg0, %arg1 : i32, i32
  }
}

</mosaic_0001>

<llo_original>
// kernel: tpu_custom_call.1
$region0: #{tpu_custom_call.1}
  #allocation0 [shape = 'u32[]', space=smem, size = 0x4, offset = 0x4, fixed_abs, tag = 'smem constant byte address 0x4 - core index']
  #allocation1 [shape = 'u32[144,128]{1,0:T(1,128)}', space=vmem, size = 0x12000, scoped, tag = 'internal scratch']
  #allocation2 [shape = 'f32[16,128]{1,0:T(8,128)}', space=vmem, size = 0x2000, scoped, tag = 'scratch operand']
  %s0 = inlined_call_operand.hbm [shape: bf16[16,128], index: 0, kind: input, shape index: {}]
  %s1 = inlined_call_operand.hbm [shape: bf16[128,128], index: 1, kind: input, shape index: {}]
  %s2 = inlined_call_operand.vmem [shape: f32[1,128], index: 2, kind: input, shape index: {}]
  %s3 = inlined_call_operand.hbm [shape: f32[16,128], index: 3, kind: output, shape index: {}]
  %s4 = sld [smem:[#allocation0]]
  $region38: #{tpu_custom_call.1} parent=0
    _
  %s6 = ssub.s32 1, %s4
  %s7 = scalar_select 0, %s6, %s4
  $region1: #{tpu_custom_call.1} parent=0
    #allocation3 [shape = 'u8[4096]{0}', space=vmem, size = 0x1000, scoped, tag = 'input window, operand 0, single buffered']
    #allocation4 [shape = 's32[1]{0}', space=sflag, size = 0x4, scoped, tag = 'scoped memory for tpu_custom_call.1']
    #allocation5 [shape = 's32[1]{0}', space=sflag, size = 0x4, scoped, tag = 'scoped memory for tpu_custom_call.1']
    #allocation6 [shape = 'u8[32768]{0}', space=vmem, size = 0x8000, scoped, tag = 'input window, operand 1, single buffered']
    #allocation7 [shape = 's32[1]{0}', space=sflag, size = 0x4, scoped, tag = 'scoped memory for tpu_custom_call.1']
    #allocation8 [shape = 'u8[8192]{0}', space=vmem, size = 0x2000, scoped, tag = 'output window, operand 0, single buffered']
    %8 = vsyncpa [#allocation4], 0
    %9 = vsyncpa [#allocation7], 0
    %10 = vsyncpa [#allocation5], 0
    // Predicated region
    $region2: #{tpu_custom_call.1} parent=1 // pred_check
      _
    $region3: #{tpu_custom_call.1} parent=1 // pred_check_branch
      %12 = sbr.rel (0) target = $region5
    $region4: #{tpu_custom_call.1} parent=1 // pred_region
      %s14 = ssub.s32 128, 128
      %15 = vsyncadd [#allocation4], %s14
      %s16 = sshll.u32 [#allocation3], 4
      %s17 = int_to_ptr.vmem [resolvable:$true] %s16
      %22 = dma.hbm_to_vmem [thread:$0]  %s0, 128, %s17, [#allocation4], 64, 64, 4
    $region5: #{tpu_custom_call.1} parent=1 // pred_fallthru
      _
    // Predicated region
    $region6: #{tpu_custom_call.1} parent=1 // pred_check
      _
    $region7: #{tpu_custom_call.1} parent=1 // pred_check_branch
      %24 = sbr.rel (0) target = $region9
    $region8: #{tpu_custom_call.1} parent=1 // pred_region
      %s26 = ssub.s32 1024, 1024
      %27 = vsyncadd [#allocation7], %s26
      %s28 = sshll.u32 [#allocation6], 4
      %s29 = int_to_ptr.vmem [resolvable:$true] %s28
      %34 = dma.hbm_to_vmem [thread:$0]  %s1, 1024, %s29, [#allocation7], 64, 64, 4
    $region9: #{tpu_custom_call.1} parent=1 // pred_fallthru
      _
    // Predicated region
    $region10: #{tpu_custom_call.1} parent=1 // pred_check
      _
    $region11: #{tpu_custom_call.1} parent=1 // pred_check_branch
      %36 = sbr.rel (0) target = $region13
    $region12: #{tpu_custom_call.1} parent=1 // pred_region
      _
    $region13: #{tpu_custom_call.1} parent=1 // pred_fallthru
      _
    // Predicated region
    $region14: #{tpu_custom_call.1} parent=1 // pred_check
      _
    $region15: #{tpu_custom_call.1} parent=1 // pred_check_branch
      %38 = sbr.rel (0) target = $region17
    $region16: #{tpu_custom_call.1} parent=1 // pred_region
      %39 = dma.done [#allocation4], 128
    $region17: #{tpu_custom_call.1} parent=1 // pred_fallthru
      _
    // Predicated region
    $region18: #{tpu_custom_call.1} parent=1 // pred_check
      _
    $region19: #{tpu_custom_call.1} parent=1 // pred_check_branch
      %41 = sbr.rel (0) target = $region21
    $region20: #{tpu_custom_call.1} parent=1 // pred_region
      %42 = dma.done [#allocation7], 1024
    $region21: #{tpu_custom_call.1} parent=1 // pred_fallthru
      _
    %p44 = scmp.eq.s32.totalorder 0, 0
    // Predicated region
    $region22: #{tpu_custom_call.1} parent=1 // pred_check
      %p45 = pneg %p44
    $region23: #{tpu_custom_call.1} parent=1 // pred_check_branch
      %47 = sbr.rel (%p45) target = $region25
    $region24: #{tpu_custom_call.1} parent=1 // pred_region
      %48 = vst [vmem:[#allocation2] sm:$0xff] 0.0
      %49 = vst [vmem:[#allocation2 + $0x8] sm:$0xff] 0.0
    $region25: #{tpu_custom_call.1} parent=1 // pred_fallthru
      _
    %v50 = vld [vmem:[#allocation2] sm:$0xff]
    %v51 = vld [vmem:[#allocation2 + $0x8] sm:$0xff]
    %v52 = vld [vmem:[#allocation3] sm:$0xf]
    %v53 = vld [vmem:[#allocation3 + $0x4] sm:$0xf]
    %v54 = vld [vmem:[#allocation6] sm:$0xf]
    %v55 = vld [vmem:[#allocation6 + $0x4] sm:$0xf]
    %v56 = vld [vmem:[#allocation6 + $0x8] sm:$0xf]
    %v57 = vld [vmem:[#allocation6 + $0xc] sm:$0xf]
    %v58 = vld [vmem:[#allocation6 + $0x10] sm:$0xf]
    %v59 = vld [vmem:[#allocation6 + $0x14] sm:$0xf]
    %v60 = vld [vmem:[#allocation6 + $0x18] sm:$0xf]
    %v61 = vld [vmem:[#allocation6 + $0x1c] sm:$0xf]
    %v62 = vld [vmem:[#allocation6 + $0x20] sm:$0xf]
    %v63 = vld [vmem:[#allocation6 + $0x24] sm:$0xf]
    %v64 = vld [vmem:[#allocation6 + $0x28] sm:$0xf]
    %v65 = vld [vmem:[#allocation6 + $0x2c] sm:$0xf]
    %v66 = vld [vmem:[#allocation6 + $0x30] sm:$0xf]
    %v67 = vld [vmem:[#allocation6 + $0x34] sm:$0xf]
    %v68 = vld [vmem:[#allocation6 + $0x38] sm:$0xf]
    %v69 = vld [vmem:[#allocation6 + $0x3c] sm:$0xf]
    %v72 = vunpack.c.l.b16 %v52
    %v73 = vunpack.c.l.b16 %v53
    %v74 = vpack.c.b16 %v73, %v72
    %v92 = vunpack.c.l.b16 %v54
    %v93 = vunpack.c.l.b16 %v55
    %v94 = vunpack.c.l.b16 %v56
    %v95 = vunpack.c.l.b16 %v57
    %v96 = vunpack.c.l.b16 %v58
    %v97 = vunpack.c.l.b16 %v59
    %v98 = vunpack.c.l.b16 %v60
    %v99 = vunpack.c.l.b16 %v61
    %v100 = vunpack.c.l.b16 %v62
    %v101 = vunpack.c.l.b16 %v63
    %v102 = vunpack.c.l.b16 %v64
    %v103 = vunpack.c.l.b16 %v65
    %v104 = vunpack.c.l.b16 %v66
    %v105 = vunpack.c.l.b16 %v67
    %v106 = vunpack.c.l.b16 %v68
    %v107 = vunpack.c.l.b16 %v69
    %v108 = vpack.c.b16 %v93, %v92
    %v109 = vpack.c.b16 %v95, %v94
    %v110 = vpack.c.b16 %v97, %v96
    %v111 = vpack.c.b16 %v99, %v98
    %v112 = vpack.c.b16 %v101, %v100
    %v113 = vpack.c.b16 %v103, %v102
    %v114 = vpack.c.b16 %v105, %v104
    %v115 = vpack.c.b16 %v107, %v106
    %124 = vmatprep.subr.bf16.mxu0 0
    %125 = vmatpush1.bf16.msra.mxu0 %v108
    %126 = vmatprep.subr.bf16.mxu0 0
    %127 = vmatpush1.bf16.msra.mxu0 %v109
    %128 = vmatprep.subr.bf16.mxu0 0
    %129 = vmatpush1.bf16.msra.mxu0 %v110
    %130 = vmatprep.subr.bf16.mxu0 0
    %131 = vmatpush1.bf16.msra.mxu0 %v111
    %132 = vmatprep.subr.bf16.mxu0 0
    %133 = vmatpush1.bf16.msra.mxu0 %v112
    %134 = vmatprep.subr.bf16.mxu0 0
    %135 = vmatpush1.bf16.msra.mxu0 %v113
    %136 = vmatprep.subr.bf16.mxu0 0
    %137 = vmatpush1.bf16.msra.mxu0 %v114
    %138 = vmatprep.subr.bf16.mxu0 0
    %139 = vmatpush1.bf16.msra.mxu0 %v115
    %140 = vmatprep.subr.bf16.mxu0 0
    %141 = vmatpush1.bf16.msra.mxu0 0
    %142 = vmatprep.subr.bf16.mxu0 0
    %143 = vmatpush1.bf16.msra.mxu0 0
    %144 = vmatprep.subr.bf16.mxu0 0
    %145 = vmatpush1.bf16.msra.mxu0 0
    %146 = vmatprep.subr.bf16.mxu0 0
    %147 = vmatpush1.bf16.msra.mxu0 0
    %148 = vmatprep.subr.bf16.mxu0 0
    %149 = vmatpush1.bf16.msra.mxu0 0
    %150 = vmatprep.subr.bf16.mxu0 0
    %151 = vmatpush1.bf16.msra.mxu0 0
    %152 = vmatprep.subr.bf16.mxu0 0
    %153 = vmatpush1.bf16.msra.mxu0 0
    %154 = vmatprep.subr.bf16.mxu0 0
    %155 = vmatpush1.bf16.msra.mxu0 0
    %156 = vmatprep.mubr.bf16.mxu0 0
    %157 = vmatmul.mubr.bf16.gmra.mrb[0].mxu0 %v74
    %v158 = vpop.f32.mrb[0].mxu0
    %v159 = vadd.f32 0.0, %v158
    %v160 = vpop.f32.mrb[0].mxu0
    %v161 = vpop.f32.mrb[0].mxu0
    %v162 = vadd.f32 0.0, %v161
    %v163 = vpop.f32.mrb[0].mxu0
    %164 = vdwg.mxu0
    %v165 = vadd.f32 %v50, %v159
    %v166 = vadd.f32 %v51, %v162
    %167 = vst [vmem:[#allocation2] sm:$0xff] %v165
    %168 = vst [vmem:[#allocation2 + $0x8] sm:$0xff] %v166
    // Predicated region
    $region26: #{tpu_custom_call.1} parent=1 // pred_check
      %p169 = pneg %p44
    $region27: #{tpu_custom_call.1} parent=1 // pred_check_branch
      %171 = sbr.rel (%p169) target = $region29
    $region28: #{tpu_custom_call.1} parent=1 // pred_region
      %v172 = vld [vmem:[#allocation2] sm:$0xff]
      %v173 = vld [vmem:[#allocation2 + $0x8] sm:$0xff]
      %v174 = vld [vmem:[%s2] sm:$0x1]
      %v176 = vlaneseq
      %v177 = vshrl.u32 %v176, 7
      %v178 = vsub.s32 0, %v177
      %v179 = vrot.slane %v174, %v178
      %v181 = vadd.f32 %v172, %v179
      %v182 = vadd.f32 %v173, %v179
      %v183 = vmax.f32 %v181, 0.0
      %v184 = vmax.f32 %v182, 0.0
      %185 = vst [vmem:[#allocation8] sm:$0xff] %v183
      %186 = vst [vmem:[#allocation8 + $0x8] sm:$0xff] %v184
    $region29: #{tpu_custom_call.1} parent=1 // pred_fallthru
      _
    // Predicated region
    $region30: #{tpu_custom_call.1} parent=1 // pred_check
      _
    $region31: #{tpu_custom_call.1} parent=1 // pred_check_branch
      %188 = sbr.rel (0) target = $region33
    $region32: #{tpu_custom_call.1} parent=1 // pred_region
      %s190 = ssub.s32 256, 256
      %191 = vsyncadd [#allocation5], %s190
      %s192 = sshll.u32 [#allocation8], 4
      %s193 = int_to_ptr.vmem [resolvable:$true] %s192
      %198 = dma.vmem_to_hbm [thread:$0]  %s193, 256, %s3, [#allocation5], 128, 128, 8
    $region33: #{tpu_custom_call.1} parent=1 // pred_fallthru
      _
    // Predicated region
    $region34: #{tpu_custom_call.1} parent=1 // pred_check
      _
    $region35: #{tpu_custom_call.1} parent=1 // pred_check_branch
      %200 = sbr.rel (0) target = $region37
    $region36: #{tpu_custom_call.1} parent=1 // pred_region
      %201 = dma.done [#allocation5], 256
    $region37: #{tpu_custom_call.1} parent=1 // pred_fallthru
      _
    %202 = vsyncpa [#allocation4], 1
    %203 = vsyncpa [#allocation7], 1
    %204 = vsyncpa [#allocation5], 1

</llo_original>
